<compile_context>
chip_gen: v7x
topology: tpu7x:2x2x1
jax: 0.10.0
libtpu: 0.0.40
codegen_flags: <defaults>
</compile_context>

<pallas_src>
import jax
import jax.numpy as jnp
from jax.experimental import pallas as pl
from jax.experimental.pallas import tpu as pltpu

GAMMA = 2.0          # focal exponent (kernel specializes gamma == 2)
IGNORE_INDEX = -100


def _focal_loss_kernel(x_ref, t_ref, o_ref, total_ref, count_ref):
    # x_ref: (TN, C) logits tile, t_ref: (TN, 1) int32 targets tile,
    # o_ref: (1, 1) f32 output, total_ref/count_ref: (1, 1) f32 VMEM scratch.
    step = pl.program_id(0)

    @pl.when(step == 0)
    def _init():
        total_ref[...] = jnp.zeros_like(total_ref)
        count_ref[...] = jnp.zeros_like(count_ref)

    x = x_ref[...].astype(jnp.float32)          # (TN, C)
    t = t_ref[...]                              # (TN, 1) int32

    # Row-wise log_softmax along the class (lane) axis.
    # This is the only full-tile transcendental pass.
    m = jnp.max(x, axis=1, keepdims=True)
    z = x - m
    lse = jnp.log(jnp.sum(jnp.exp(z), axis=1, keepdims=True))
    logpt = z - lse                             # (TN, C)

    # Gather logpt at the target class: select fused with the lane reduce
    # (no float one-hot materialization, no full-tile exp/pow).  Ignored /
    # padded rows (t == IGNORE_INDEX) match no class and yield picked == 0.
    cls = jax.lax.broadcasted_iota(jnp.int32, logpt.shape, 1)       # (TN, C)
    picked = jnp.sum(jnp.where(cls == t, logpt, 0.0),
                     axis=1, keepdims=True)                          # (TN, 1)

    # Focal modulation on the picked column only; gamma == 2 -> explicit square.
    pt_t = jnp.exp(picked)
    one_minus = 1.0 - pt_t
    focal = one_minus * one_minus * picked                           # (TN, 1)

    # Validity mask: ignore_index rows AND wrapper-padded rows (the wrapper
    # pads targets with IGNORE_INDEX, so padding is excluded explicitly here).
    valid = t != IGNORE_INDEX                                        # (TN, 1)
    total_ref[...] += jnp.sum(jnp.where(valid, -focal, 0.0),
                              axis=0, keepdims=True)
    count_ref[...] += jnp.sum(valid.astype(jnp.float32),
                              axis=0, keepdims=True)

    @pl.when(step == pl.num_programs(0) - 1)
    def _finalize():
        o_ref[...] = total_ref[...] / count_ref[...]


def _round_up(v, m):
    return ((v + m - 1) // m) * m


def focal_loss(logits, targets, *, max_tile_rows=1024):
    """logits: [N, C] float, targets: [N] int -> scalar f32 mean focal loss."""
    N, C = logits.shape

    # Row-tile size: multiple of 8 (sublane), capped so the double-buffered f32
    # logits block stays <= ~8 MiB -> safe headroom on every generation
    # (v7x: 64 MiB physical / 32 MiB scoped VMEM).
    bytes_per_row = C * 4 * 2                    # f32 block, 2 pipeline buffers
    tn = min(max_tile_rows, _round_up(N, 8))
    while tn > 8 and tn * bytes_per_row > 8 * 1024 * 1024:
        tn //= 2
    tn = max(8, (tn // 8) * 8)

    # Pad rows: padded targets are IGNORE_INDEX so the kernel excludes them
    # from both the loss sum and the valid-row count (explicit, not garbage).
    n_pad = _round_up(N, tn)
    x = jnp.pad(logits, ((0, n_pad - N), (0, 0)))
    t = jnp.pad(targets.astype(jnp.int32), (0, n_pad - N),
                constant_values=IGNORE_INDEX).reshape(n_pad, 1)

    out = pl.pallas_call(
        _focal_loss_kernel,
        out_shape=jax.ShapeDtypeStruct((1, 1), jnp.float32),
        grid_spec=pltpu.PrefetchScalarGridSpec(
            num_scalar_prefetch=0,
            grid=(n_pad // tn,),
            in_specs=[
                pl.BlockSpec((tn, C), lambda i: (i, 0)),
                pl.BlockSpec((tn, 1), lambda i: (i, 0)),
            ],
            out_specs=pl.BlockSpec((1, 1), lambda i: (0, 0)),
            scratch_shapes=[
                pltpu.VMEM((1, 1), jnp.float32),   # running sum of -focal logpt
                pltpu.VMEM((1, 1), jnp.float32),   # running count of valid rows
            ],
        ),
        compiler_params=pltpu.CompilerParams(
            # Row axis carries a running reduction into scratch -> sequential.
            dimension_semantics=("arbitrary",),
            vmem_limit_bytes=32 * 1024 * 1024,
        ),
    )(x, t)
    return out[0, 0]


def _focal_loss_ref(logits, targets):
    # Pure-JAX reference (mask the ignore index BEFORE the gather to avoid the
    # out-of-bounds NaN fill that broke the previous check).
    x = logits.astype(jnp.float32)
    logpt = jax.nn.log_softmax(x, axis=1)
    pt = jnp.exp(logpt)
    focal_logpt = ((1.0 - pt) ** GAMMA) * logpt
    valid = targets != IGNORE_INDEX
    safe_t = jnp.where(valid, targets, 0)
    picked = jnp.take_along_axis(focal_logpt, safe_t.reshape(-1, 1), axis=1)[:, 0]
    per_row = jnp.where(valid, -picked, 0.0)
    return jnp.sum(per_row) / jnp.sum(valid.astype(jnp.float32))


if __name__ == "__main__":
    key = jax.random.PRNGKey(0)
    kx, kt = jax.random.split(key)

    N, C = 80, 32
    logits = jax.random.normal(kx, (N, C), dtype=jnp.float32)
    targets = jax.random.randint(kt, (N,), 0, C, dtype=jnp.int32)
    targets = targets.at[3].set(IGNORE_INDEX)     # exercise ignore_index path
    targets = targets.at[41].set(IGNORE_INDEX)

    # max_tile_rows=32 -> grid of 3 row tiles with a padded final tile:
    # exercises cross-step accumulation and padded-row masking.
    loss = focal_loss(logits, targets, max_tile_rows=32)
    jax.block_until_ready(loss)

    ref = _focal_loss_ref(logits, targets)
    assert jnp.allclose(loss, ref, atol=1e-4, rtol=1e-4), (loss, ref)

    print("KERNEL_OK")
</pallas_src>

<mosaic_0001>
module attributes {stable_mosaic.version = 11 : i64} {
  func.func @_focal_loss_kernel(%arg0: i32, %arg1: memref<32x32xf32, #tpu.memory_space<vmem>>, %arg2: memref<32x1xi32, #tpu.memory_space<vmem>>, %arg3: memref<1x1xf32, #tpu.memory_space<vmem>>, %arg4: memref<1x1xf32, #tpu.memory_space<vmem>>, %arg5: memref<1x1xf32, #tpu.memory_space<vmem>>) attributes {dimension_semantics = [#tpu.dimension_semantics<arbitrary>], iteration_bounds = array<i64: 3>, scalar_prefetch = 0 : i64, scratch_operands = 2 : i64, tpu.core_type = #tpu.core_type<tc>, window_params = [{transform_indices = @transform_0, window_bounds = array<i64: 32, 32>}, {transform_indices = @transform_1, window_bounds = array<i64: 32, 1>}, {pipeline_mode = #tpu.pipeline_mode<synchronous>, transform_indices = @transform_2, window_bounds = array<i64: 1, 1>}]} {
    %c0_i32 = arith.constant 0 : i32
    %0 = arith.cmpi eq, %arg0, %c0_i32 : i32
    %1 = arith.extui %0 : i1 to i32
    %c0_i32_0 = arith.constant 0 : i32
    %2 = arith.cmpi ne, %1, %c0_i32_0 : i32
    scf.if %2 {
      %cst_21 = arith.constant 0.000000e+00 : f32
      %48 = vector.broadcast %cst_21 : f32 to vector<1x1xf32>
      %c0_22 = arith.constant 0 : index
      %c0_23 = arith.constant 0 : index
      %49 = vector.load %arg4[%c0_22, %c0_23] : memref<1x1xf32, #tpu.memory_space<vmem>>, vector<1x1xf32>
      tpu.vector_store %arg4[%c0_22, %c0_23], %48 {strides = array<i32>} : memref<1x1xf32, #tpu.memory_space<vmem>>, vector<1x1xf32>,
      %cst_24 = arith.constant 0.000000e+00 : f32
      %50 = vector.broadcast %cst_24 : f32 to vector<1x1xf32>
      %c0_25 = arith.constant 0 : index
      %c0_26 = arith.constant 0 : index
      %51 = vector.load %arg5[%c0_25, %c0_26] : memref<1x1xf32, #tpu.memory_space<vmem>>, vector<1x1xf32>
      tpu.vector_store %arg5[%c0_25, %c0_26], %50 {strides = array<i32>} : memref<1x1xf32, #tpu.memory_space<vmem>>, vector<1x1xf32>,
    } else {
    }
    %c0 = arith.constant 0 : index
    %c0_1 = arith.constant 0 : index
    %3 = vector.load %arg1[%c0, %c0_1] : memref<32x32xf32, #tpu.memory_space<vmem>>, vector<32x32xf32>
    %c0_2 = arith.constant 0 : index
    %c0_3 = arith.constant 0 : index
    %4 = vector.load %arg2[%c0_2, %c0_3] : memref<32x1xi32, #tpu.memory_space<vmem>>, vector<32x1xi32>
    %cst = arith.constant dense<0xFF800000> : vector<32xf32>
    %5 = vector.multi_reduction <maximumf>, %3, %cst [1] : vector<32x32xf32> to vector<32xf32>
    %6 = vector.shape_cast %5 : vector<32xf32> to vector<32x1xf32>
    %7 = vector.broadcast %6 : vector<32x1xf32> to vector<32x32xf32>
    %8 = arith.subf %3, %7 : vector<32x32xf32>
    %9 = math.exp %8 : vector<32x32xf32>
    %cst_4 = arith.constant dense<0.000000e+00> : vector<32xf32>
    %10 = vector.multi_reduction <add>, %9, %cst_4 [1] : vector<32x32xf32> to vector<32xf32>
    %11 = vector.shape_cast %10 : vector<32xf32> to vector<32x1xf32>
    %12 = math.log %11 : vector<32x1xf32>
    %13 = vector.broadcast %12 : vector<32x1xf32> to vector<32x32xf32>
    %14 = arith.subf %8, %13 : vector<32x32xf32>
    %15 = tpu.iota {dimensions = array<i32: 1>} : vector<32x32xi32>
    %16 = vector.broadcast %4 : vector<32x1xi32> to vector<32x32xi32>
    %17 = arith.cmpi eq, %15, %16 : vector<32x32xi32>
    %cst_5 = arith.constant 0.000000e+00 : f32
    %18 = vector.broadcast %cst_5 : f32 to vector<32x32xf32>
    %19 = arith.select %17, %14, %18 : vector<32x32xi1>, vector<32x32xf32>
    %cst_6 = arith.constant dense<0.000000e+00> : vector<32xf32>
    %20 = vector.multi_reduction <add>, %19, %cst_6 [1] : vector<32x32xf32> to vector<32xf32>
    %21 = vector.shape_cast %20 : vector<32xf32> to vector<32x1xf32>
    %22 = math.exp %21 : vector<32x1xf32>
    %cst_7 = arith.constant 1.000000e+00 : f32
    %23 = vector.broadcast %cst_7 : f32 to vector<32x1xf32>
    %24 = arith.subf %23, %22 : vector<32x1xf32>
    %25 = arith.mulf %24, %24 : vector<32x1xf32>
    %26 = arith.mulf %25, %21 : vector<32x1xf32>
    %c-100_i32 = arith.constant -100 : i32
    %27 = vector.broadcast %c-100_i32 : i32 to vector<32x1xi32>
    %28 = arith.cmpi ne, %4, %27 : vector<32x1xi32>
    %c0_8 = arith.constant 0 : index
    %c0_9 = arith.constant 0 : index
    %29 = vector.load %arg4[%c0_8, %c0_9] : memref<1x1xf32, #tpu.memory_space<vmem>>, vector<1x1xf32>
    %cst_10 = arith.constant 0.000000e+00 : f32
    %30 = vector.broadcast %cst_10 : f32 to vector<32x1xf32>
    %31 = arith.subf %30, %26 : vector<32x1xf32>
    %cst_11 = arith.constant 0.000000e+00 : f32
    %32 = vector.broadcast %cst_11 : f32 to vector<32x1xf32>
    %33 = arith.select %28, %31, %32 : vector<32x1xi1>, vector<32x1xf32>
    %cst_12 = arith.constant dense<0.000000e+00> : vector<1xf32>
    %34 = vector.multi_reduction <add>, %33, %cst_12 [0] : vector<32x1xf32> to vector<1xf32>
    %35 = vector.shape_cast %34 : vector<1xf32> to vector<1x1xf32>
    %36 = arith.addf %29, %35 : vector<1x1xf32>
    %c0_13 = arith.constant 0 : index
    %c0_14 = arith.constant 0 : index
    %37 = vector.load %arg4[%c0_13, %c0_14] : memref<1x1xf32, #tpu.memory_space<vmem>>, vector<1x1xf32>
    tpu.vector_store %arg4[%c0_13, %c0_14], %36 {strides = array<i32>} : memref<1x1xf32, #tpu.memory_space<vmem>>, vector<1x1xf32>,
    %c0_15 = arith.constant 0 : index
    %c0_16 = arith.constant 0 : index
    %38 = vector.load %arg5[%c0_15, %c0_16] : memref<1x1xf32, #tpu.memory_space<vmem>>, vector<1x1xf32>
    %39 = arith.extui %28 : vector<32x1xi1> to vector<32x1xi32>
    %40 = arith.sitofp %39 : vector<32x1xi32> to vector<32x1xf32>
    %cst_17 = arith.constant dense<0.000000e+00> : vector<1xf32>
    %41 = vector.multi_reduction <add>, %40, %cst_17 [0] : vector<32x1xf32> to vector<1xf32>
    %42 = vector.shape_cast %41 : vector<1xf32> to vector<1x1xf32>
    %43 = arith.addf %38, %42 : vector<1x1xf32>
    %c0_18 = arith.constant 0 : index
    %c0_19 = arith.constant 0 : index
    %44 = vector.load %arg5[%c0_18, %c0_19] : memref<1x1xf32, #tpu.memory_space<vmem>>, vector<1x1xf32>
    tpu.vector_store %arg5[%c0_18, %c0_19], %43 {strides = array<i32>} : memref<1x1xf32, #tpu.memory_space<vmem>>, vector<1x1xf32>,
    %c2_i32 = arith.constant 2 : i32
    %45 = arith.cmpi eq, %arg0, %c2_i32 : i32
    %46 = arith.extui %45 : i1 to i32
    %c0_i32_20 = arith.constant 0 : i32
    %47 = arith.cmpi ne, %46, %c0_i32_20 : i32
    scf.if %47 {
      %c0_21 = arith.constant 0 : index
      %c0_22 = arith.constant 0 : index
      %48 = vector.load %arg4[%c0_21, %c0_22] : memref<1x1xf32, #tpu.memory_space<vmem>>, vector<1x1xf32>
      %c0_23 = arith.constant 0 : index
      %c0_24 = arith.constant 0 : index
      %49 = vector.load %arg5[%c0_23, %c0_24] : memref<1x1xf32, #tpu.memory_space<vmem>>, vector<1x1xf32>
      %50 = arith.divf %48, %49 : vector<1x1xf32>
      %c0_25 = arith.constant 0 : index
      %c0_26 = arith.constant 0 : index
      %51 = vector.load %arg3[%c0_25, %c0_26] : memref<1x1xf32, #tpu.memory_space<vmem>>, vector<1x1xf32>
      tpu.vector_store %arg3[%c0_25, %c0_26], %50 {strides = array<i32>} : memref<1x1xf32, #tpu.memory_space<vmem>>, vector<1x1xf32>,
    } else {
    }
    return
  }
  func.func @transform_0(%arg0: i32) -> (i32, i32) {
    %c0_i32 = arith.constant 0 : i32
    %c0_i32_0 = arith.constant 0 : i32
    return %arg0, %c0_i32 : i32, i32
  }
  func.func @transform_1(%arg0: i32) -> (i32, i32) {
    %c0_i32 = arith.constant 0 : i32
    %c0_i32_0 = arith.constant 0 : i32
    return %arg0, %c0_i32 : i32, i32
  }
  func.func @transform_2(%arg0: i32) -> (i32, i32) {
    %c0_i32 = arith.constant 0 : i32
    %c0_i32_0 = arith.constant 0 : i32
    %c0_i32_1 = arith.constant 0 : i32
    return %c0_i32, %c0_i32_0 : i32, i32
  }
}

</mosaic_0001>

<llo_original>
// kernel: tpu_custom_call.1
$region0: #{tpu_custom_call.1}
  #allocation0 [shape = 'u32[]', space=smem, size = 0x4, offset = 0x4, fixed_abs, tag = 'smem constant byte address 0x4 - core index']
  #allocation1 [shape = 'u32[144,128]{1,0:T(1,128)}', space=vmem, size = 0x12000, scoped, tag = 'internal scratch']
  #allocation2 [shape = 'f32[1,1]{1,0:T(1,128)}', space=vmem, size = 0x200, scoped, tag = 'scratch operand']
  #allocation3 [shape = 'f32[1,1]{1,0:T(1,128)}', space=vmem, size = 0x200, scoped, tag = 'scratch operand']
  %s0 = inlined_call_operand.vmem [shape: f32[96,32], index: 0, kind: input, shape index: {}]
  %s1 = inlined_call_operand.vmem [shape: s32[96,1], index: 1, kind: input, shape index: {}]
  %s2 = inlined_call_operand.hbm [shape: f32[1,1], index: 2, kind: output, shape index: {}]
  %s3 = sld [smem:[#allocation0]]
  $region49: #{tpu_custom_call.1} parent=0
    _
  %s5 = ssub.s32 1, %s3
  %s6 = scalar_select 0, %s5, %s3
  $region1: #{tpu_custom_call.1} parent=0
    #allocation4 [shape = 'u8[512]{0}', space=vmem, size = 0x400, scoped, tag = 'output window, operand 0, single buffered']
    #allocation5 [shape = 's32[2]{0}', space=sflag, size = 0x8, scoped, tag = 'scoped memory for tpu_custom_call.1']
    %7 = vsyncpa [#allocation5], 0
    loop: start=0, step=1, limit=5
    $region2: #{tpu_custom_call.1} parent=1 // loop_pre_header
      _
    $region3: #{tpu_custom_call.1} parent=1 // loop_header
      %s9 = sphi 0, %s13
      %p10 = scmp.ge.s32.totalorder %s9, 5
      %s19 = sphi 0, %s21
      %s22 = sphi 0, %s19
      %s23 = sphi 0, %s22
      %s39 = sphi 0, %s23
      %s45 = sphi 0, %s47
      %s48 = sphi 0, %s45
      %s49 = sphi 0, %s48
      %s65 = sphi 0, %s49
      %s69 = sphi 0, %s69
      %s71 = sphi 0, %s69
      %s72 = sphi 0, %s71
      %s86 = sphi 0, %s72
    $region4: #{tpu_custom_call.1} parent=1 // loop_header_branch
      %12 = sbr.rel (%p10) target = $region8
    $region5: #{tpu_custom_call.1} parent=1 // loop_body
      %s14 = ssub.s32 %s9, 1
      %s15 = ssub.s32 %s9, 2
      %s16 = sadd.s32 %s9, 1
      %s17 = ssub.s32 %s9, %s16
      %p18 = scmp.eq.s32.totalorder %s17, 0
      %s20 = sadd.s32 %s19, 1
      %s21 = scalar_select %p18, %s19, %s20
      %p24 = pneg %p18
      %p25 = scmp.eq.s32.totalorder %s9, 2
      %p26 = por %p24, %p25
      %p27 = scmp.ne.s32.totalorder %s19, %s22
      %p28 = scmp.eq.s32.totalorder %s9, 0
      %p29 = por %p27, %p28
      %p30 = scmp.ne.s32.totalorder %s19, %s22
      %p31 = scmp.eq.s32.totalorder %s14, 2
      %p32 = por %p30, %p31
      %p33 = scmp.ne.s32.totalorder %s22, %s23
      %p34 = scmp.eq.s32.totalorder %s14, 0
      %p35 = por %p33, %p34
      %p36 = scmp.ne.s32.totalorder %s22, %s23
      %p37 = scmp.eq.s32.totalorder %s15, 2
      %p38 = por %p36, %p37
      %p40 = scmp.ne.s32.totalorder %s23, %s39
      %p41 = scmp.eq.s32.totalorder %s15, 0
      %p42 = por %p40, %p41
      %s43 = ssub.s32 %s9, %s16
      %p44 = scmp.eq.s32.totalorder %s43, 0
      %s46 = sadd.s32 %s45, 1
      %s47 = scalar_select %p44, %s45, %s46
      %p50 = pneg %p44
      %p51 = scmp.eq.s32.totalorder %s9, 2
      %p52 = por %p50, %p51
      %p53 = scmp.ne.s32.totalorder %s45, %s48
      %p54 = scmp.eq.s32.totalorder %s9, 0
      %p55 = por %p53, %p54
      %p56 = scmp.ne.s32.totalorder %s45, %s48
      %p57 = scmp.eq.s32.totalorder %s14, 2
      %p58 = por %p56, %p57
      %p59 = scmp.ne.s32.totalorder %s48, %s49
      %p60 = scmp.eq.s32.totalorder %s14, 0
      %p61 = por %p59, %p60
      %p62 = scmp.ne.s32.totalorder %s48, %s49
      %p63 = scmp.eq.s32.totalorder %s15, 2
      %p64 = por %p62, %p63
      %p66 = scmp.ne.s32.totalorder %s49, %s65
      %p67 = scmp.eq.s32.totalorder %s15, 0
      %p68 = por %p66, %p67
      %s70 = sadd.s32 %s69, 1
      %p73 = scmp.eq.s32.totalorder %s9, 2
      %p74 = scmp.ne.s32.totalorder %s69, %s71
      %p75 = scmp.eq.s32.totalorder %s9, 0
      %p76 = por %p74, %p75
      %p77 = scmp.ne.s32.totalorder %s69, %s71
      %p78 = scmp.eq.s32.totalorder %s14, 2
      %p79 = por %p77, %p78
      %p80 = scmp.ne.s32.totalorder %s71, %s72
      %p81 = scmp.eq.s32.totalorder %s14, 0
      %p82 = por %p80, %p81
      %p83 = scmp.ne.s32.totalorder %s71, %s72
      %p84 = scmp.eq.s32.totalorder %s15, 2
      %p85 = por %p83, %p84
      %p87 = scmp.ne.s32.totalorder %s72, %s86
      %p88 = scmp.eq.s32.totalorder %s15, 0
      %p89 = por %p87, %p88
      %p90 = scmp.le.s32.totalorder 1, %s9
      %p91 = scmp.lt.s32.totalorder %s9, 4
      %p92 = pnand %p90, %p91
      %p93 = pneg %p92
      // Predicated region
      $region9: #{tpu_custom_call.1} parent=5 // pred_check
        _
      $region10: #{tpu_custom_call.1} parent=5 // pred_check_branch
        %95 = sbr.rel (%p92) target = $region12
      $region11: #{tpu_custom_call.1} parent=5 // pred_region
        %s96 = ssub.s32 %s9, 1
      $region12: #{tpu_custom_call.1} parent=5 // pred_fallthru
        _
      %p97 = scmp.lt.s32.totalorder %s9, 3
      // Predicated region
      $region13: #{tpu_custom_call.1} parent=5 // pred_check
        %p98 = pneg %p97
      $region14: #{tpu_custom_call.1} parent=5 // pred_check_branch
        %100 = sbr.rel (%p98) target = $region16
      $region15: #{tpu_custom_call.1} parent=5 // pred_region
        // Predicated region
        $region17: #{tpu_custom_call.1} parent=15 // pred_check
          %p101 = pneg %p29
        $region18: #{tpu_custom_call.1} parent=15 // pred_check_branch
          %103 = sbr.rel (%p101) target = $region20
        $region19: #{tpu_custom_call.1} parent=15 // pred_region
          %s104 = smul.u32 4, %s9
          %p105 = scmp.lt.s32.totalorder %s104, 11
          %s106 = scalar_select %p105, %s104, 11
          %s107 = smul.addr %s106, 8
          %s108 = scalar_lea.vmem %s0, %s107
          %s109 = smul.u32 4, %s9
        $region20: #{tpu_custom_call.1} parent=15 // pred_fallthru
          _
        // Predicated region
        $region21: #{tpu_custom_call.1} parent=15 // pred_check
          %p110 = pneg %p55
        $region22: #{tpu_custom_call.1} parent=15 // pred_check_branch
          %112 = sbr.rel (%p110) target = $region24
        $region23: #{tpu_custom_call.1} parent=15 // pred_region
          %s113 = smul.u32 4, %s9
          %p114 = scmp.lt.s32.totalorder %s113, 11
          %s115 = scalar_select %p114, %s113, 11
          %s116 = smul.addr %s115, 8
          %s117 = scalar_lea.vmem %s1, %s116
          %s118 = smul.u32 4, %s9
        $region24: #{tpu_custom_call.1} parent=15 // pred_fallthru
          _
      $region16: #{tpu_custom_call.1} parent=5 // pred_fallthru
        _
      %p119 = scmp.le.s32.totalorder 1, %s9
      %p120 = scmp.lt.s32.totalorder %s9, 4
      %p121 = pnand %p119, %p120
      %p122 = pneg %p121
      // Predicated region
      $region25: #{tpu_custom_call.1} parent=5 // pred_check
        _
      $region26: #{tpu_custom_call.1} parent=5 // pred_check_branch
        %124 = sbr.rel (%p121) target = $region28
      $region27: #{tpu_custom_call.1} parent=5 // pred_region
        %s125 = ssub.s32 %s9, 1
        %s126 = smul.u32 4, %s14
        %p127 = scmp.lt.s32.totalorder %s126, 11
        %s128 = scalar_select %p127, %s126, 11
        %s129 = smul.addr %s128, 8
        %s130 = scalar_lea.vmem %s0, %s129
        %p131 = pneg %p35
        %p132 = pneg %p32
        %s133 = smul.u32 4, %s14
        %p134 = scmp.lt.s32.totalorder %s133, 11
        %s135 = scalar_select %p134, %s133, 11
        %s136 = smul.addr %s135, 8
        %s137 = scalar_lea.vmem %s1, %s136
        %p138 = pneg %p61
        %p139 = pneg %p58
        %p140 = pneg %p82
        %p141 = pneg %p79
        %s142 = smul.u32 4, %s14
        %p143 = scmp.lt.s32.totalorder %s142, 11
        %s144 = scalar_select %p143, %s142, 11
        %s145 = smul.addr %s144, 8
        %s146 = scalar_lea.vmem %s0, %s145
        %s147 = smul.u32 4, %s14
        %s148 = smul.u32 4, %s14
        %p149 = scmp.lt.s32.totalorder %s148, 11
        %s150 = scalar_select %p149, %s148, 11
        %s151 = smul.addr %s150, 8
        %s152 = scalar_lea.vmem %s1, %s151
        %s153 = smul.u32 4, %s14
        %p154 = scmp.eq.s32.totalorder %s14, 0
        // Predicated region
        $region29: #{tpu_custom_call.1} parent=27 // pred_check
          %p155 = pneg %p154
        $region30: #{tpu_custom_call.1} parent=27 // pred_check_branch
          %157 = sbr.rel (%p155) target = $region32
        $region31: #{tpu_custom_call.1} parent=27 // pred_region
          %vm158 = vcmask 0
          %159 = vst.msk [vmem:[#allocation2] sm:$0x1] %vm158, 0.0
          %160 = vst.msk [vmem:[#allocation3] sm:$0x1] %vm158, 0.0
        $region32: #{tpu_custom_call.1} parent=27 // pred_fallthru
          _
        %v161 = vld [vmem:[%s146] sm:$0xff]
        %v162 = vld [vmem:[%s146 + $0x8] sm:$0xff]
        %v163 = vld [vmem:[%s146 + $0x10] sm:$0xff]
        %v164 = vld [vmem:[%s146 + $0x18] sm:$0xff]
        %v165 = vld [vmem:[%s152] sm:$0xff]
        %v166 = vld [vmem:[%s152 + $0x8] sm:$0xff]
        %v167 = vld [vmem:[%s152 + $0x10] sm:$0xff]
        %v168 = vld [vmem:[%s152 + $0x18] sm:$0xff]
        %vm169 = vcmask 261120
        %v170 = vsel %vm169, %v161, -inf
        %171 = vmax.xlane.f32.xlu0 %v170
        %v172 = vpop.xlane.xlu0 %171
        %v173 = vsel %vm169, %v162, -inf
        %174 = vmax.xlane.f32.xlu0 %v173
        %v175 = vpop.xlane.xlu0 %174
        %v176 = vsel %vm169, %v163, -inf
        %177 = vmax.xlane.f32.xlu0 %v176
        %v178 = vpop.xlane.xlu0 %177
        %v179 = vsel %vm169, %v164, -inf
        %180 = vmax.xlane.f32.xlu0 %v179
        %v181 = vpop.xlane.xlu0 %180
        %v182 = vsub.f32 %v161, %v172
        %v183 = vsub.f32 %v162, %v175
        %v184 = vsub.f32 %v163, %v178
        %v185 = vsub.f32 %v164, %v181
        %v186 = vmul.f32 %v182, 1.442695
        %v187 = vpow.pop %v186
        %v188 = vmul.f32 %v183, 1.442695
        %v189 = vpow.pop %v188
        %v190 = vmul.f32 %v184, 1.442695
        %v191 = vpow.pop %v190
        %v192 = vmul.f32 %v185, 1.442695
        %v193 = vpow.pop %v192
        %v194 = vsel %vm169, %v187, 0.0
        %195 = vadd.xlane.f32.xlu0 %v194
        %v196 = vpop.xlane.xlu0 %195
        %v197 = vsel %vm169, %v189, 0.0
        %198 = vadd.xlane.f32.xlu0 %v197
        %v199 = vpop.xlane.xlu0 %198
        %v200 = vsel %vm169, %v191, 0.0
        %201 = vadd.xlane.f32.xlu0 %v200
        %v202 = vpop.xlane.xlu0 %201
        %v203 = vsel %vm169, %v193, 0.0
        %204 = vadd.xlane.f32.xlu0 %v203
        %v205 = vpop.xlane.xlu0 %204
        %v206 = vlog2.pop %v196
        %v207 = vmul.f32 %v206, 0.6931472
        %v208 = vlog2.pop %v199
        %v209 = vmul.f32 %v208, 0.6931472
        %v210 = vlog2.pop %v202
        %v211 = vmul.f32 %v210, 0.6931472
        %v212 = vlog2.pop %v205
        %v213 = vmul.f32 %v212, 0.6931472
        %v214 = vsub.f32 %v182, %v207
        %v215 = vsub.f32 %v183, %v209
        %v216 = vsub.f32 %v184, %v211
        %v217 = vsub.f32 %v185, %v213
        %v218 = vlaneseq
        %v219 = vand.u32 %v218, 127
        %220 = vset.pattern.permute.xlu0 0
        %221 = vperm.xlu0 %220, %v165
        %v222 = vpop.permute.xlu0 %221
        %223 = vset.pattern.permute.xlu0 0
        %224 = vperm.xlu0 %223, %v166
        %v225 = vpop.permute.xlu0 %224
        %226 = vset.pattern.permute.xlu0 0
        %227 = vperm.xlu0 %226, %v167
        %v228 = vpop.permute.xlu0 %227
        %229 = vset.pattern.permute.xlu0 0
        %230 = vperm.xlu0 %229, %v168
        %v231 = vpop.permute.xlu0 %230
        %vm232 = vcmp.eq.s32.totalorder %v219, %v222
        %vm233 = vcmp.eq.s32.totalorder %v219, %v225
        %vm234 = vcmp.eq.s32.totalorder %v219, %v228
        %vm235 = vcmp.eq.s32.totalorder %v219, %v231
        %v236 = vsel %vm232, %v214, 0.0
        %v237 = vsel %vm233, %v215, 0.0
        %v238 = vsel %vm234, %v216, 0.0
        %v239 = vsel %vm235, %v217, 0.0
        %v240 = vsel %vm169, %v236, 0.0
        %241 = vadd.xlane.f32.xlu0 %v240
        %v242 = vpop.xlane.xlu0 %241
        %v243 = vsel %vm169, %v237, 0.0
        %244 = vadd.xlane.f32.xlu0 %v243
        %v245 = vpop.xlane.xlu0 %244
        %v246 = vsel %vm169, %v238, 0.0
        %247 = vadd.xlane.f32.xlu0 %v246
        %v248 = vpop.xlane.xlu0 %247
        %v249 = vsel %vm169, %v239, 0.0
        %250 = vadd.xlane.f32.xlu0 %v249
        %v251 = vpop.xlane.xlu0 %250
        %v252 = vmul.f32 %v242, 1.442695
        %v253 = vpow.pop %v252
        %v254 = vmul.f32 %v245, 1.442695
        %v255 = vpow.pop %v254
        %v256 = vmul.f32 %v248, 1.442695
        %v257 = vpow.pop %v256
        %v258 = vmul.f32 %v251, 1.442695
        %v259 = vpow.pop %v258
        %v260 = vsub.f32 1.0, %v253
        %v261 = vsub.f32 1.0, %v255
        %v262 = vsub.f32 1.0, %v257
        %v263 = vsub.f32 1.0, %v259
        %v264 = vmul.f32 %v260, %v260
        %v265 = vmul.f32 %v261, %v261
        %v266 = vmul.f32 %v262, %v262
        %v267 = vmul.f32 %v263, %v263
        %v268 = vmul.f32 %v264, %v242
        %v269 = vmul.f32 %v265, %v245
        %v270 = vmul.f32 %v266, %v248
        %v271 = vmul.f32 %v267, %v251
        %vm272 = vcmp.ne.s32.totalorder %v165, 4294967196
        %vm273 = vcmp.ne.s32.totalorder %v166, 4294967196
        %vm274 = vcmp.ne.s32.totalorder %v167, 4294967196
        %vm275 = vcmp.ne.s32.totalorder %v168, 4294967196
        %v276 = vld [vmem:[#allocation2] sm:$0x1]
        %v277 = vsub.f32 0.0, %v268
        %v278 = vsub.f32 0.0, %v269
        %v279 = vsub.f32 0.0, %v270
        %v280 = vsub.f32 0.0, %v271
        %v281 = vsel %vm272, %v277, 0.0
        %v282 = vsel %vm273, %v278, 0.0
        %v283 = vsel %vm274, %v279, 0.0
        %v284 = vsel %vm275, %v280, 0.0
        %vm285 = vcmask 7168
        %v286 = vsel %vm285, %v281, 0.0
        %v287 = vsel %vm285, %v282, 0.0
        %v288 = vadd.f32 %v286, %v287
        %v289 = vsel %vm285, %v283, 0.0
        %v290 = vadd.f32 %v288, %v289
        %v291 = vsel %vm285, %v284, 0.0
        %v292 = vadd.f32 %v290, %v291
        %v293 = vrot.slane %v292, 4
        %v294 = vadd.f32 %v292, %v293
        %v295 = vrot.slane %v294, 2
        %v296 = vadd.f32 %v294, %v295
        %v297 = vrot.slane %v296, 1
        %v298 = vadd.f32 %v296, %v297
        %v299 = vadd.f32 %v276, %v298
        %vm300 = vcmask 0
        %301 = vst.msk [vmem:[#allocation2] sm:$0x1] %vm300, %v299
        %v302 = vld [vmem:[#allocation3] sm:$0x1]
        %v303 = vsel %vm272, 1, 0
        %v304 = vsel %vm273, 1, 0
        %v305 = vsel %vm274, 1, 0
        %v306 = vsel %vm275, 1, 0
        %v307 = vcvt.s32.f32 %v303
        %v308 = vcvt.s32.f32 %v304
        %v309 = vcvt.s32.f32 %v305
        %v310 = vcvt.s32.f32 %v306
        %v311 = vsel %vm285, %v307, 0.0
        %v312 = vsel %vm285, %v308, 0.0
        %v313 = vadd.f32 %v311, %v312
        %v314 = vsel %vm285, %v309, 0.0
        %v315 = vadd.f32 %v313, %v314
        %v316 = vsel %vm285, %v310, 0.0
        %v317 = vadd.f32 %v315, %v316
        %v318 = vrot.slane %v317, 4
        %v319 = vadd.f32 %v317, %v318
        %v320 = vrot.slane %v319, 2
        %v321 = vadd.f32 %v319, %v320
        %v322 = vrot.slane %v321, 1
        %v323 = vadd.f32 %v321, %v322
        %v324 = vadd.f32 %v302, %v323
        %325 = vst.msk [vmem:[#allocation3] sm:$0x1] %vm300, %v324
        %p326 = scmp.eq.s32.totalorder %s14, 2
        // Predicated region
        $region33: #{tpu_custom_call.1} parent=27 // pred_check
          %p327 = pneg %p326
        $region34: #{tpu_custom_call.1} parent=27 // pred_check_branch
          %329 = sbr.rel (%p327) target = $region36
        $region35: #{tpu_custom_call.1} parent=27 // pred_region
          %v330 = vld [vmem:[#allocation2] sm:$0x1]
          %v331 = vld [vmem:[#allocation3] sm:$0x1]
          %v332 = vrcp.pop %v331
          %v333 = vmul.f32 %v330, %v332
          %334 = vst.msk [vmem:[#allocation4] sm:$0x1] %vm300, %v333
        $region36: #{tpu_custom_call.1} parent=27 // pred_fallthru
          _
        // Predicated region
        $region37: #{tpu_custom_call.1} parent=27 // pred_check
          %p335 = pneg %p79
        $region38: #{tpu_custom_call.1} parent=27 // pred_check_branch
          %337 = sbr.rel (%p335) target = $region40
        $region39: #{tpu_custom_call.1} parent=27 // pred_region
          %s339 = ssub.s32 16, 16
          %340 = vsyncadd [#allocation5], %s339
          %s342 = sshll.u32 [#allocation4], 4
          %s343 = int_to_ptr.vmem [resolvable:$true] %s342
          %345 = dma.vmem_to_hbm [thread:$0]  %s343, 16, %s2, [#allocation5]
        $region40: #{tpu_custom_call.1} parent=27 // pred_fallthru
          _
        // Predicated region
        $region41: #{tpu_custom_call.1} parent=27 // pred_check
          %p346 = pneg %p79
        $region42: #{tpu_custom_call.1} parent=27 // pred_check_branch
          %348 = sbr.rel (%p346) target = $region44
        $region43: #{tpu_custom_call.1} parent=27 // pred_region
          %349 = dma.done [#allocation5], 16
        $region44: #{tpu_custom_call.1} parent=27 // pred_fallthru
          _
      $region28: #{tpu_custom_call.1} parent=5 // pred_fallthru
        _
      %p350 = scmp.le.s32.totalorder 2, %s9
      // Predicated region
      $region45: #{tpu_custom_call.1} parent=5 // pred_check
        %p351 = pneg %p350
      $region46: #{tpu_custom_call.1} parent=5 // pred_check_branch
        %353 = sbr.rel (%p351) target = $region48
      $region47: #{tpu_custom_call.1} parent=5 // pred_region
        %s354 = ssub.s32 %s9, 2
      $region48: #{tpu_custom_call.1} parent=5 // pred_fallthru
        _
    $region6: #{tpu_custom_call.1} parent=1 // loop_footer
      %s13 = sadd.s32 1, %s9
    $region7: #{tpu_custom_call.1} parent=1 // loop_footer_branch
      %8 = sbr.rel target = $region3
    $region8: #{tpu_custom_call.1} parent=1 // loop_exit
      _
    %355 = vsyncpa [#allocation5], 1
    %s356 = scalar_lea.sflag [#allocation5], 1
    %357 = vsyncpa %s356, 1

</llo_original>
